<compile_context>
chip_gen: v7x
topology: tpu7x:2x2x1
jax: 0.10.0
libtpu: 0.0.40
codegen_flags: <defaults>
</compile_context>

<pallas_src>
import jax
import jax.numpy as jnp
from jax import lax
from jax.experimental import pallas as pl
from jax.experimental.pallas import tpu as pltpu

_LANE = 128
_SMALL_BATCH_FASTPATH = 128   # below this many rows, pallas_call launch overhead dominates
_DEFAULT_BLOCK_B = 512        # rows/tile: 512*2048*4B*2buf = 8 MiB << 16 MiB v5e scoped VMEM


def _round_up(x, m):
    return (x + m - 1) // m * m


def _fused_linear_kernel(x_ref, w_ref, b_ref, o_ref):
    # x_ref: (TB, Dp) f32 streamed tile; w_ref: (1, Dp) f32 resident fused row;
    # b_ref: (1,) f32 scalar bias in SMEM; o_ref: (TB, 1) f32.
    x = x_ref[...]
    w = w_ref[...]                                 # broadcasts over the TB rows
    h = jnp.sum(x * w, axis=-1, keepdims=True)     # VPU mul + XLU lane reduce
    h = h + b_ref[0]                               # scalar bias from SMEM
    o_ref[...] = (h * h).astype(o_ref.dtype)       # final square


def fuse_params(params):
    """Fold the bias-only 4-layer linear chain into one lane-padded (1, Dp) row + scalar bias."""
    w1, b1, w2, b2, w3, b3, w4, b4 = params
    hp = lax.Precision.HIGHEST
    w_fused = jnp.dot(jnp.dot(jnp.dot(w1, w2, precision=hp), w3, precision=hp),
                      w4, precision=hp)                                    # (D, 1)
    b_fused = jnp.dot(jnp.dot(jnp.dot(b1, w2, precision=hp) + b2, w3,
                              precision=hp) + b3, w4, precision=hp) + b4   # (1, 1)
    D = w_fused.shape[0]
    Dp = _round_up(D, _LANE)
    w_row = jnp.zeros((1, Dp), jnp.float32).at[0, :D].set(w_fused[:, 0])
    return w_row, b_fused.reshape(1).astype(jnp.float32)


def linear_net2_forward(x, fused_params, *, block_b=_DEFAULT_BLOCK_B):
    """x: (B, ...) -> (B, 1).  Fused dot + bias + square."""
    w_row, b_vec = fused_params
    B = x.shape[0]
    x2d = x.reshape(B, -1).astype(jnp.float32)     # the `view` in the PyTorch forward
    D = x2d.shape[1]
    Dp = w_row.shape[1]

    if B < _SMALL_BATCH_FASTPATH:
        # Tiny batches: custom-call launch overhead dwarfs the kernel body.
        return jnp.square(jnp.sum(x2d * w_row[:, :D], axis=-1, keepdims=True) + b_vec[0])

    if D != Dp:
        # One-time lane pad to a 128 multiple; padded weight lanes are zero so
        # the result is unchanged.  TODO(synk): pad upstream to avoid this copy.
        x2d = jnp.pad(x2d, ((0, 0), (0, Dp - D)))

    tb = min(block_b, B)                 # multiple of 8 (block_b) or == full B
    grid = (pl.cdiv(B, tb),)

    cost = pl.CostEstimate(
        flops=2 * B * Dp + 2 * B,
        transcendentals=0,
        bytes_accessed=(B * Dp + Dp + 1 + B) * 4,
    )

    return pl.pallas_call(
        _fused_linear_kernel,
        out_shape=jax.ShapeDtypeStruct((B, 1), jnp.float32),
        grid=grid,
        in_specs=[
            pl.BlockSpec((tb, Dp), lambda i: (i, 0)),             # streamed x tiles
            pl.BlockSpec((1, Dp), lambda i: (0, 0)),              # resident fused weight
            pl.BlockSpec(memory_space=pltpu.MemorySpace.SMEM),    # scalar bias
        ],
        out_specs=pl.BlockSpec((tb, 1), lambda i: (i, 0)),
        compiler_params=pltpu.CompilerParams(
            dimension_semantics=("parallel",)),
        cost_estimate=cost,
    )(x2d, w_row, b_vec)


def init_params(key, dimen):
    """nn.Linear default init: U(-1/sqrt(fan_in), 1/sqrt(fan_in)).
    Weights stored as (in_features, out_features), biases as (1, out_features)."""
    dims = [dimen, dimen // 10, dimen // 100, dimen // 1000, 1]
    params = []
    for i in range(4):
        fan_in, fan_out = dims[i], dims[i + 1]
        key, kw, kb = jax.random.split(key, 3)
        bound = 1.0 / jnp.sqrt(float(fan_in))
        w = jax.random.uniform(kw, (fan_in, fan_out), jnp.float32, -bound, bound)
        b = jax.random.uniform(kb, (1, fan_out), jnp.float32, -bound, bound)
        params += [w, b]
    return tuple(params)


def reference_forward(x, params):
    """Plain-JAX reference of the original (unfused) 4-layer forward."""
    w1, b1, w2, b2, w3, b3, w4, b4 = params
    hp = lax.Precision.HIGHEST
    h = x.reshape(x.shape[0], -1)
    h = jnp.dot(h, w1, precision=hp) + b1
    h = jnp.dot(h, w2, precision=hp) + b2
    h = jnp.dot(h, w3, precision=hp) + b3
    h = jnp.dot(h, w4, precision=hp) + b4
    return h ** 2


if __name__ == "__main__":
    dimen = 1024          # hidden sizes 102, 10, 1, 1; lane-aligned (multiple of 128)
    batch = 256

    key = jax.random.PRNGKey(0)
    key, kx = jax.random.split(key)
    x = jax.random.normal(kx, (batch, dimen), jnp.float32)

    params = init_params(jax.random.PRNGKey(0), dimen)
    fused = fuse_params(params)           # fold the linear chain once, at param time

    # Kernel path: demo-sized block (128 rows) -> 2-step batch grid.
    # Production callers should keep the default block_b=512.
    out = linear_net2_forward(x, fused, block_b=128)
    out = jax.block_until_ready(out)
    ref = reference_forward(x, params)
    assert out.shape == (batch, 1), out.shape
    assert jnp.allclose(out, ref, atol=1e-4, rtol=1e-3)

    # Tiny-batch fast path (plain XLA; a pallas_call here would be launch-bound).
    x_small = x[:8]
    out_small = jax.block_until_ready(linear_net2_forward(x_small, fused))
    assert out_small.shape == (8, 1)
    assert jnp.allclose(out_small, reference_forward(x_small, params), atol=1e-4, rtol=1e-3)

    print("KERNEL_OK")
</pallas_src>

<mosaic_0001>
module attributes {stable_mosaic.version = 11 : i64} {
  func.func @_fused_linear_kernel(%arg0: i32, %arg1: memref<128x1024xf32, #tpu.memory_space<vmem>>, %arg2: memref<1x1024xf32, #tpu.memory_space<vmem>>, %arg3: memref<1xf32, #tpu.memory_space<smem>>, %arg4: memref<128x1xf32, #tpu.memory_space<vmem>>) attributes {dimension_semantics = [#tpu.dimension_semantics<parallel>], iteration_bounds = array<i64: 2>, scalar_prefetch = 0 : i64, scratch_operands = 0 : i64, tpu.core_type = #tpu.core_type<tc>, window_params = [{transform_indices = @transform_0, window_bounds = array<i64: 128, 1024>}, {pipeline_mode = #tpu.pipeline_mode<synchronous>, transform_indices = @transform_1, window_bounds = array<i64: 1, 1024>}, {transform_indices = @transform_2, window_bounds = array<i64: 1>}, {transform_indices = @transform_3, window_bounds = array<i64: 128, 1>}]} {
    %c0 = arith.constant 0 : index
    %c0_0 = arith.constant 0 : index
    %0 = vector.load %arg1[%c0, %c0_0] : memref<128x1024xf32, #tpu.memory_space<vmem>>, vector<128x1024xf32>
    %c0_1 = arith.constant 0 : index
    %c0_2 = arith.constant 0 : index
    %1 = vector.load %arg2[%c0_1, %c0_2] : memref<1x1024xf32, #tpu.memory_space<vmem>>, vector<1x1024xf32>
    %2 = vector.broadcast %1 : vector<1x1024xf32> to vector<128x1024xf32>
    %3 = arith.mulf %0, %2 : vector<128x1024xf32>
    %cst = arith.constant dense<0.000000e+00> : vector<128xf32>
    %4 = vector.multi_reduction <add>, %3, %cst [1] : vector<128x1024xf32> to vector<128xf32>
    %5 = vector.shape_cast %4 : vector<128xf32> to vector<128x1xf32>
    %c0_3 = arith.constant 0 : index
    %6 = memref.load %arg3[%c0_3] : memref<1xf32, #tpu.memory_space<smem>>
    %7 = vector.broadcast %6 : f32 to vector<128x1xf32>
    %8 = arith.addf %5, %7 : vector<128x1xf32>
    %9 = arith.mulf %8, %8 : vector<128x1xf32>
    %c0_4 = arith.constant 0 : index
    %c0_5 = arith.constant 0 : index
    %10 = vector.load %arg4[%c0_4, %c0_5] : memref<128x1xf32, #tpu.memory_space<vmem>>, vector<128x1xf32>
    tpu.vector_store %arg4[%c0_4, %c0_5], %9 {strides = array<i32>} : memref<128x1xf32, #tpu.memory_space<vmem>>, vector<128x1xf32>,
    return
  }
  func.func @transform_0(%arg0: i32) -> (i32, i32) {
    %c0_i32 = arith.constant 0 : i32
    %c0_i32_0 = arith.constant 0 : i32
    return %arg0, %c0_i32 : i32, i32
  }
  func.func @transform_1(%arg0: i32) -> (i32, i32) {
    %c0_i32 = arith.constant 0 : i32
    %c0_i32_0 = arith.constant 0 : i32
    %c0_i32_1 = arith.constant 0 : i32
    return %c0_i32, %c0_i32_0 : i32, i32
  }
  func.func @transform_2(%arg0: i32) -> i32 {
    %c0_i32 = arith.constant 0 : i32
    %c0_i32_0 = arith.constant 0 : i32
    return %c0_i32 : i32
  }
  func.func @transform_3(%arg0: i32) -> (i32, i32) {
    %c0_i32 = arith.constant 0 : i32
    %c0_i32_0 = arith.constant 0 : i32
    return %arg0, %c0_i32 : i32, i32
  }
}

</mosaic_0001>

<llo_original>
// kernel: tpu_custom_call.1
$region0: #{tpu_custom_call.1}
  #allocation0 [shape = 'u32[]', space=smem, size = 0x4, offset = 0x4, fixed_abs, tag = 'smem constant byte address 0x4 - core index']
  #allocation1 [shape = 'u32[144,128]{1,0:T(1,128)}', space=vmem, size = 0x12000, scoped, tag = 'internal scratch']
  #allocation2 [shape = 'f32[1]{0:T(128)S(6)}', space=smem, size = 0x200, scoped, tag = 'scoped memory for tpu_custom_call.1']
  %s0 = inlined_call_operand.hbm [shape: f32[256,1024], index: 0, kind: input, shape index: {}]
  %s1 = inlined_call_operand.hbm [shape: f32[1,1024], index: 1, kind: input, shape index: {}]
  %s2 = inlined_call_operand.<no memory space> [shape: f32[1], index: 2, kind: input, shape index: {}]
  %s3 = inlined_call_operand.vmem [shape: f32[256,1], index: 3, kind: output, shape index: {}]
  %s4 = sld [smem:[#allocation0]]
  $region53: #{tpu_custom_call.1} parent=0
    _
  %s6 = ssub.s32 1, %s4
  %s7 = scalar_select 0, %s6, %s4
  %8 = sst [smem:[#allocation2]] %s2
  $region1: #{tpu_custom_call.1} parent=0
    #allocation3 [shape = 'u8[1048576]{0}', space=vmem, size = 0x100000, scoped, tag = 'input window, operand 0']
    #allocation4 [shape = 's32[2]{0}', space=sflag, size = 0x8, scoped, tag = 'scoped memory for tpu_custom_call.1']
    #allocation5 [shape = 'u8[4096]{0}', space=vmem, size = 0x1000, scoped, tag = 'input window, operand 1, single buffered']
    #allocation6 [shape = 's32[1]{0}', space=sflag, size = 0x4, scoped, tag = 'scoped memory for tpu_custom_call.1']
    %9 = vsyncpa [#allocation4], 0
    %s10 = scalar_lea.sflag [#allocation4], 1
    %11 = vsyncpa %s10, 0
    %12 = vsyncpa [#allocation6], 0
    loop: start=0, step=1, limit=4
    $region2: #{tpu_custom_call.1} parent=1 // loop_pre_header
      _
    $region3: #{tpu_custom_call.1} parent=1 // loop_header
      %s14 = sphi 0, %s18
      %p15 = scmp.ge.s32.totalorder %s14, 4
      %s24 = sphi 0, %s26
      %s27 = sphi 0, %s24
      %s28 = sphi 0, %s27
      %s44 = sphi 0, %s28
      %s48 = sphi 0, %s48
      %s50 = sphi 0, %s48
      %s51 = sphi 0, %s50
      %s65 = sphi 0, %s51
      %s69 = sphi 0, %s69
      %s71 = sphi 0, %s69
      %s72 = sphi 0, %s71
      %s86 = sphi 0, %s72
      %s92 = sphi 0, %s94
      %s95 = sphi 0, %s92
      %s96 = sphi 0, %s95
      %s112 = sphi 0, %s96
    $region4: #{tpu_custom_call.1} parent=1 // loop_header_branch
      %17 = sbr.rel (%p15) target = $region8
    $region5: #{tpu_custom_call.1} parent=1 // loop_body
      %s19 = ssub.s32 %s14, 1
      %s20 = ssub.s32 %s14, 2
      %s21 = sadd.s32 %s14, 1
      %s22 = ssub.s32 %s14, %s21
      %p23 = scmp.eq.s32.totalorder %s22, 0
      %s25 = sadd.s32 %s24, 1
      %s26 = scalar_select %p23, %s24, %s25
      %p29 = pneg %p23
      %p30 = scmp.eq.s32.totalorder %s14, 1
      %p31 = por %p29, %p30
      %p32 = scmp.ne.s32.totalorder %s24, %s27
      %p33 = scmp.eq.s32.totalorder %s14, 0
      %p34 = por %p32, %p33
      %p35 = scmp.ne.s32.totalorder %s24, %s27
      %p36 = scmp.eq.s32.totalorder %s19, 1
      %p37 = por %p35, %p36
      %p38 = scmp.ne.s32.totalorder %s27, %s28
      %p39 = scmp.eq.s32.totalorder %s19, 0
      %p40 = por %p38, %p39
      %p41 = scmp.ne.s32.totalorder %s27, %s28
      %p42 = scmp.eq.s32.totalorder %s20, 1
      %p43 = por %p41, %p42
      %p45 = scmp.ne.s32.totalorder %s28, %s44
      %p46 = scmp.eq.s32.totalorder %s20, 0
      %p47 = por %p45, %p46
      %s49 = sadd.s32 %s48, 1
      %p52 = scmp.eq.s32.totalorder %s14, 1
      %p53 = scmp.ne.s32.totalorder %s48, %s50
      %p54 = scmp.eq.s32.totalorder %s14, 0
      %p55 = por %p53, %p54
      %p56 = scmp.ne.s32.totalorder %s48, %s50
      %p57 = scmp.eq.s32.totalorder %s19, 1
      %p58 = por %p56, %p57
      %p59 = scmp.ne.s32.totalorder %s50, %s51
      %p60 = scmp.eq.s32.totalorder %s19, 0
      %p61 = por %p59, %p60
      %p62 = scmp.ne.s32.totalorder %s50, %s51
      %p63 = scmp.eq.s32.totalorder %s20, 1
      %p64 = por %p62, %p63
      %p66 = scmp.ne.s32.totalorder %s51, %s65
      %p67 = scmp.eq.s32.totalorder %s20, 0
      %p68 = por %p66, %p67
      %s70 = sadd.s32 %s69, 1
      %p73 = scmp.eq.s32.totalorder %s14, 1
      %p74 = scmp.ne.s32.totalorder %s69, %s71
      %p75 = scmp.eq.s32.totalorder %s14, 0
      %p76 = por %p74, %p75
      %p77 = scmp.ne.s32.totalorder %s69, %s71
      %p78 = scmp.eq.s32.totalorder %s19, 1
      %p79 = por %p77, %p78
      %p80 = scmp.ne.s32.totalorder %s71, %s72
      %p81 = scmp.eq.s32.totalorder %s19, 0
      %p82 = por %p80, %p81
      %p83 = scmp.ne.s32.totalorder %s71, %s72
      %p84 = scmp.eq.s32.totalorder %s20, 1
      %p85 = por %p83, %p84
      %p87 = scmp.ne.s32.totalorder %s72, %s86
      %p88 = scmp.eq.s32.totalorder %s20, 0
      %p89 = por %p87, %p88
      %s90 = ssub.s32 %s14, %s21
      %p91 = scmp.eq.s32.totalorder %s90, 0
      %s93 = sadd.s32 %s92, 1
      %s94 = scalar_select %p91, %s92, %s93
      %p97 = pneg %p91
      %p98 = scmp.eq.s32.totalorder %s14, 1
      %p99 = por %p97, %p98
      %p100 = scmp.ne.s32.totalorder %s92, %s95
      %p101 = scmp.eq.s32.totalorder %s14, 0
      %p102 = por %p100, %p101
      %p103 = scmp.ne.s32.totalorder %s92, %s95
      %p104 = scmp.eq.s32.totalorder %s19, 1
      %p105 = por %p103, %p104
      %p106 = scmp.ne.s32.totalorder %s95, %s96
      %p107 = scmp.eq.s32.totalorder %s19, 0
      %p108 = por %p106, %p107
      %p109 = scmp.ne.s32.totalorder %s95, %s96
      %p110 = scmp.eq.s32.totalorder %s20, 1
      %p111 = por %p109, %p110
      %p113 = scmp.ne.s32.totalorder %s96, %s112
      %p114 = scmp.eq.s32.totalorder %s20, 0
      %p115 = por %p113, %p114
      %p116 = scmp.le.s32.totalorder 1, %s14
      %p117 = scmp.lt.s32.totalorder %s14, 3
      %p118 = pnand %p116, %p117
      %p119 = pneg %p118
      // Predicated region
      $region9: #{tpu_custom_call.1} parent=5 // pred_check
        _
      $region10: #{tpu_custom_call.1} parent=5 // pred_check_branch
        %121 = sbr.rel (%p118) target = $region12
      $region11: #{tpu_custom_call.1} parent=5 // pred_region
        %s122 = ssub.s32 %s14, 1
        // Predicated region
        $region13: #{tpu_custom_call.1} parent=11 // pred_check
          %p123 = pneg %p61
        $region14: #{tpu_custom_call.1} parent=11 // pred_check_branch
          %125 = sbr.rel (%p123) target = $region16
        $region15: #{tpu_custom_call.1} parent=11 // pred_region
          %s127 = ssub.s32 128, 128
          %128 = vsyncadd [#allocation6], %s127
          %s130 = sshll.u32 [#allocation5], 4
          %s131 = int_to_ptr.vmem [resolvable:$true] %s130
          %133 = dma.hbm_to_vmem [thread:$0]  %s1, 128, %s131, [#allocation6]
        $region16: #{tpu_custom_call.1} parent=11 // pred_fallthru
          _
        // Predicated region
        $region17: #{tpu_custom_call.1} parent=11 // pred_check
          %p134 = pneg %p82
        $region18: #{tpu_custom_call.1} parent=11 // pred_check_branch
          %136 = sbr.rel (%p134) target = $region20
        $region19: #{tpu_custom_call.1} parent=11 // pred_region
          _
        $region20: #{tpu_custom_call.1} parent=11 // pred_fallthru
          _
      $region12: #{tpu_custom_call.1} parent=5 // pred_fallthru
        _
      %p137 = scmp.lt.s32.totalorder %s14, 2
      // Predicated region
      $region21: #{tpu_custom_call.1} parent=5 // pred_check
        %p138 = pneg %p137
      $region22: #{tpu_custom_call.1} parent=5 // pred_check_branch
        %140 = sbr.rel (%p138) target = $region24
      $region23: #{tpu_custom_call.1} parent=5 // pred_region
        // Predicated region
        $region25: #{tpu_custom_call.1} parent=23 // pred_check
          %p141 = pneg %p34
        $region26: #{tpu_custom_call.1} parent=23 // pred_check_branch
          %143 = sbr.rel (%p141) target = $region28
        $region27: #{tpu_custom_call.1} parent=23 // pred_region
          %s144 = sand.u32 %s24, 1
          %s145 = scalar_lea.sflag [#allocation4], %s144
          %s146 = sand.u32 %s24, 1
          %s147 = smul.addr %s146, 1024
          %s148 = scalar_lea.vmem [#allocation3], %s147
          %s149 = smul.u32 16, %s14
          %s151 = ssub.s32 16384, 16384
          %152 = vsyncadd %s145, %s151
          %s153 = smul.addr %s149, 8
          %s154 = smul.addr %s153, 128
          %s155 = scalar_lea.hbm %s0, %s154
          %s156 = sshll.u32 %s148, 4
          %s157 = int_to_ptr.vmem [resolvable:$true] %s156
          %162 = dma.hbm_to_vmem [thread:$0]  %s155, 16384, %s157, %s145, 1024, 1024, 64
        $region28: #{tpu_custom_call.1} parent=23 // pred_fallthru
          _
      $region24: #{tpu_custom_call.1} parent=5 // pred_fallthru
        _
      %p163 = scmp.le.s32.totalorder 1, %s14
      %p164 = scmp.lt.s32.totalorder %s14, 3
      %p165 = pnand %p163, %p164
      %p166 = pneg %p165
      // Predicated region
      $region29: #{tpu_custom_call.1} parent=5 // pred_check
        _
      $region30: #{tpu_custom_call.1} parent=5 // pred_check_branch
        %168 = sbr.rel (%p165) target = $region32
      $region31: #{tpu_custom_call.1} parent=5 // pred_region
        %s169 = ssub.s32 %s14, 1
        %s170 = sand.u32 %s27, 1
        %s171 = scalar_lea.sflag [#allocation4], %s170
        %s172 = sand.u32 %s27, 1
        %s173 = smul.addr %s172, 1024
        %s174 = scalar_lea.vmem [#allocation3], %s173
        // Predicated region
        $region33: #{tpu_custom_call.1} parent=31 // pred_check
          %p175 = pneg %p40
        $region34: #{tpu_custom_call.1} parent=31 // pred_check_branch
          %177 = sbr.rel (%p175) target = $region36
        $region35: #{tpu_custom_call.1} parent=31 // pred_region
          %178 = dma.done %s171, 16384
        $region36: #{tpu_custom_call.1} parent=31 // pred_fallthru
          _
        // Predicated region
        $region37: #{tpu_custom_call.1} parent=31 // pred_check
          %p179 = pneg %p61
        $region38: #{tpu_custom_call.1} parent=31 // pred_check_branch
          %181 = sbr.rel (%p179) target = $region40
        $region39: #{tpu_custom_call.1} parent=31 // pred_region
          %182 = dma.done [#allocation6], 128
        $region40: #{tpu_custom_call.1} parent=31 // pred_fallthru
          _
        %s183 = sand.u32 %s27, 1
        %s184 = scalar_lea.sflag [#allocation4], %s183
        %s185 = sand.u32 %s27, 1
        %s186 = smul.addr %s185, 1024
        %s187 = scalar_lea.vmem [#allocation3], %s186
        %p188 = pneg %p40
        %p189 = pneg %p37
        %p190 = pneg %p61
        %p191 = pneg %p58
        %p192 = pneg %p82
        %p193 = pneg %p79
        %p194 = pneg %p108
        %p195 = pneg %p105
        %s196 = smul.u32 16, %s19
        %p197 = scmp.lt.s32.totalorder %s196, 31
        %s198 = scalar_select %p197, %s196, 31
        %s199 = smul.addr %s198, 8
        %s200 = scalar_lea.vmem %s3, %s199
        %s201 = smul.u32 16, %s19
        %s202 = smul.u32 16, %s19
        %p203 = scmp.lt.s32.totalorder %s202, 31
        %s204 = scalar_select %p203, %s202, 31
        %s205 = smul.addr %s204, 8
        %s206 = scalar_lea.vmem %s3, %s205
        %s207 = smul.u32 16, %s19
        %v208 = vld [vmem:[%s174] sm:$0xff]
        %v209 = vld [vmem:[%s174 + $0x8] sm:$0xff]
        %v210 = vld [vmem:[%s174 + $0x10] sm:$0xff]
        %v211 = vld [vmem:[%s174 + $0x18] sm:$0xff]
        %v212 = vld [vmem:[%s174 + $0x20] sm:$0xff]
        %v213 = vld [vmem:[%s174 + $0x28] sm:$0xff]
        %v214 = vld [vmem:[%s174 + $0x30] sm:$0xff]
        %v215 = vld [vmem:[%s174 + $0x38] sm:$0xff]
        %v216 = vld [vmem:[%s174 + $0x40] sm:$0xff]
        %v217 = vld [vmem:[%s174 + $0x48] sm:$0xff]
        %v218 = vld [vmem:[%s174 + $0x50] sm:$0xff]
        %v219 = vld [vmem:[%s174 + $0x58] sm:$0xff]
        %v220 = vld [vmem:[%s174 + $0x60] sm:$0xff]
        %v221 = vld [vmem:[%s174 + $0x68] sm:$0xff]
        %v222 = vld [vmem:[%s174 + $0x70] sm:$0xff]
        %v223 = vld [vmem:[%s174 + $0x78] sm:$0xff]
        %v224 = vld [vmem:[%s174 + $0x80] sm:$0xff]
        %v225 = vld [vmem:[%s174 + $0x88] sm:$0xff]
        %v226 = vld [vmem:[%s174 + $0x90] sm:$0xff]
        %v227 = vld [vmem:[%s174 + $0x98] sm:$0xff]
        %v228 = vld [vmem:[%s174 + $0xa0] sm:$0xff]
        %v229 = vld [vmem:[%s174 + $0xa8] sm:$0xff]
        %v230 = vld [vmem:[%s174 + $0xb0] sm:$0xff]
        %v231 = vld [vmem:[%s174 + $0xb8] sm:$0xff]
        %v232 = vld [vmem:[%s174 + $0xc0] sm:$0xff]
        %v233 = vld [vmem:[%s174 + $0xc8] sm:$0xff]
        %v234 = vld [vmem:[%s174 + $0xd0] sm:$0xff]
        %v235 = vld [vmem:[%s174 + $0xd8] sm:$0xff]
        %v236 = vld [vmem:[%s174 + $0xe0] sm:$0xff]
        %v237 = vld [vmem:[%s174 + $0xe8] sm:$0xff]
        %v238 = vld [vmem:[%s174 + $0xf0] sm:$0xff]
        %v239 = vld [vmem:[%s174 + $0xf8] sm:$0xff]
        %v240 = vld [vmem:[%s174 + $0x100] sm:$0xff]
        %v241 = vld [vmem:[%s174 + $0x108] sm:$0xff]
        %v242 = vld [vmem:[%s174 + $0x110] sm:$0xff]
        %v243 = vld [vmem:[%s174 + $0x118] sm:$0xff]
        %v244 = vld [vmem:[%s174 + $0x120] sm:$0xff]
        %v245 = vld [vmem:[%s174 + $0x128] sm:$0xff]
        %v246 = vld [vmem:[%s174 + $0x130] sm:$0xff]
        %v247 = vld [vmem:[%s174 + $0x138] sm:$0xff]
        %v248 = vld [vmem:[%s174 + $0x140] sm:$0xff]
        %v249 = vld [vmem:[%s174 + $0x148] sm:$0xff]
        %v250 = vld [vmem:[%s174 + $0x150] sm:$0xff]
        %v251 = vld [vmem:[%s174 + $0x158] sm:$0xff]
        %v252 = vld [vmem:[%s174 + $0x160] sm:$0xff]
        %v253 = vld [vmem:[%s174 + $0x168] sm:$0xff]
        %v254 = vld [vmem:[%s174 + $0x170] sm:$0xff]
        %v255 = vld [vmem:[%s174 + $0x178] sm:$0xff]
        %v256 = vld [vmem:[%s174 + $0x180] sm:$0xff]
        %v257 = vld [vmem:[%s174 + $0x188] sm:$0xff]
        %v258 = vld [vmem:[%s174 + $0x190] sm:$0xff]
        %v259 = vld [vmem:[%s174 + $0x198] sm:$0xff]
        %v260 = vld [vmem:[%s174 + $0x1a0] sm:$0xff]
        %v261 = vld [vmem:[%s174 + $0x1a8] sm:$0xff]
        %v262 = vld [vmem:[%s174 + $0x1b0] sm:$0xff]
        %v263 = vld [vmem:[%s174 + $0x1b8] sm:$0xff]
        %v264 = vld [vmem:[%s174 + $0x1c0] sm:$0xff]
        %v265 = vld [vmem:[%s174 + $0x1c8] sm:$0xff]
        %v266 = vld [vmem:[%s174 + $0x1d0] sm:$0xff]
        %v267 = vld [vmem:[%s174 + $0x1d8] sm:$0xff]
        %v268 = vld [vmem:[%s174 + $0x1e0] sm:$0xff]
        %v269 = vld [vmem:[%s174 + $0x1e8] sm:$0xff]
        %v270 = vld [vmem:[%s174 + $0x1f0] sm:$0xff]
        %v271 = vld [vmem:[%s174 + $0x1f8] sm:$0xff]
        %v272 = vld [vmem:[%s174 + $0x200] sm:$0xff]
        %v273 = vld [vmem:[%s174 + $0x208] sm:$0xff]
        %v274 = vld [vmem:[%s174 + $0x210] sm:$0xff]
        %v275 = vld [vmem:[%s174 + $0x218] sm:$0xff]
        %v276 = vld [vmem:[%s174 + $0x220] sm:$0xff]
        %v277 = vld [vmem:[%s174 + $0x228] sm:$0xff]
        %v278 = vld [vmem:[%s174 + $0x230] sm:$0xff]
        %v279 = vld [vmem:[%s174 + $0x238] sm:$0xff]
        %v280 = vld [vmem:[%s174 + $0x240] sm:$0xff]
        %v281 = vld [vmem:[%s174 + $0x248] sm:$0xff]
        %v282 = vld [vmem:[%s174 + $0x250] sm:$0xff]
        %v283 = vld [vmem:[%s174 + $0x258] sm:$0xff]
        %v284 = vld [vmem:[%s174 + $0x260] sm:$0xff]
        %v285 = vld [vmem:[%s174 + $0x268] sm:$0xff]
        %v286 = vld [vmem:[%s174 + $0x270] sm:$0xff]
        %v287 = vld [vmem:[%s174 + $0x278] sm:$0xff]
        %v288 = vld [vmem:[%s174 + $0x280] sm:$0xff]
        %v289 = vld [vmem:[%s174 + $0x288] sm:$0xff]
        %v290 = vld [vmem:[%s174 + $0x290] sm:$0xff]
        %v291 = vld [vmem:[%s174 + $0x298] sm:$0xff]
        %v292 = vld [vmem:[%s174 + $0x2a0] sm:$0xff]
        %v293 = vld [vmem:[%s174 + $0x2a8] sm:$0xff]
        %v294 = vld [vmem:[%s174 + $0x2b0] sm:$0xff]
        %v295 = vld [vmem:[%s174 + $0x2b8] sm:$0xff]
        %v296 = vld [vmem:[%s174 + $0x2c0] sm:$0xff]
        %v297 = vld [vmem:[%s174 + $0x2c8] sm:$0xff]
        %v298 = vld [vmem:[%s174 + $0x2d0] sm:$0xff]
        %v299 = vld [vmem:[%s174 + $0x2d8] sm:$0xff]
        %v300 = vld [vmem:[%s174 + $0x2e0] sm:$0xff]
        %v301 = vld [vmem:[%s174 + $0x2e8] sm:$0xff]
        %v302 = vld [vmem:[%s174 + $0x2f0] sm:$0xff]
        %v303 = vld [vmem:[%s174 + $0x2f8] sm:$0xff]
        %v304 = vld [vmem:[%s174 + $0x300] sm:$0xff]
        %v305 = vld [vmem:[%s174 + $0x308] sm:$0xff]
        %v306 = vld [vmem:[%s174 + $0x310] sm:$0xff]
        %v307 = vld [vmem:[%s174 + $0x318] sm:$0xff]
        %v308 = vld [vmem:[%s174 + $0x320] sm:$0xff]
        %v309 = vld [vmem:[%s174 + $0x328] sm:$0xff]
        %v310 = vld [vmem:[%s174 + $0x330] sm:$0xff]
        %v311 = vld [vmem:[%s174 + $0x338] sm:$0xff]
        %v312 = vld [vmem:[%s174 + $0x340] sm:$0xff]
        %v313 = vld [vmem:[%s174 + $0x348] sm:$0xff]
        %v314 = vld [vmem:[%s174 + $0x350] sm:$0xff]
        %v315 = vld [vmem:[%s174 + $0x358] sm:$0xff]
        %v316 = vld [vmem:[%s174 + $0x360] sm:$0xff]
        %v317 = vld [vmem:[%s174 + $0x368] sm:$0xff]
        %v318 = vld [vmem:[%s174 + $0x370] sm:$0xff]
        %v319 = vld [vmem:[%s174 + $0x378] sm:$0xff]
        %v320 = vld [vmem:[%s174 + $0x380] sm:$0xff]
        %v321 = vld [vmem:[%s174 + $0x388] sm:$0xff]
        %v322 = vld [vmem:[%s174 + $0x390] sm:$0xff]
        %v323 = vld [vmem:[%s174 + $0x398] sm:$0xff]
        %v324 = vld [vmem:[%s174 + $0x3a0] sm:$0xff]
        %v325 = vld [vmem:[%s174 + $0x3a8] sm:$0xff]
        %v326 = vld [vmem:[%s174 + $0x3b0] sm:$0xff]
        %v327 = vld [vmem:[%s174 + $0x3b8] sm:$0xff]
        %v328 = vld [vmem:[%s174 + $0x3c0] sm:$0xff]
        %v329 = vld [vmem:[%s174 + $0x3c8] sm:$0xff]
        %v330 = vld [vmem:[%s174 + $0x3d0] sm:$0xff]
        %v331 = vld [vmem:[%s174 + $0x3d8] sm:$0xff]
        %v332 = vld [vmem:[%s174 + $0x3e0] sm:$0xff]
        %v333 = vld [vmem:[%s174 + $0x3e8] sm:$0xff]
        %v334 = vld [vmem:[%s174 + $0x3f0] sm:$0xff]
        %v335 = vld [vmem:[%s174 + $0x3f8] sm:$0xff]
        %v336 = vld [vmem:[#allocation5] sm:$0xff]
        %v338 = vlaneseq
        %v339 = vshrl.u32 %v338, 7
        %v340 = vsub.s32 0, %v339
        %v341 = vrot.slane %v336, %v340
        %v342 = vlaneseq
        %v343 = vshrl.u32 %v342, 7
        %v344 = vsub.s32 1, %v343
        %v345 = vrot.slane %v336, %v344
        %v346 = vlaneseq
        %v347 = vshrl.u32 %v346, 7
        %v348 = vsub.s32 2, %v347
        %v349 = vrot.slane %v336, %v348
        %v350 = vlaneseq
        %v351 = vshrl.u32 %v350, 7
        %v352 = vsub.s32 3, %v351
        %v353 = vrot.slane %v336, %v352
        %v354 = vlaneseq
        %v355 = vshrl.u32 %v354, 7
        %v356 = vsub.s32 4, %v355
        %v357 = vrot.slane %v336, %v356
        %v358 = vlaneseq
        %v359 = vshrl.u32 %v358, 7
        %v360 = vsub.s32 5, %v359
        %v361 = vrot.slane %v336, %v360
        %v362 = vlaneseq
        %v363 = vshrl.u32 %v362, 7
        %v364 = vsub.s32 6, %v363
        %v365 = vrot.slane %v336, %v364
        %v366 = vlaneseq
        %v367 = vshrl.u32 %v366, 7
        %v368 = vsub.s32 7, %v367
        %v369 = vrot.slane %v336, %v368
        %v378 = vmul.f32 %v208, %v341
        %v379 = vmul.f32 %v209, %v345
        %v380 = vmul.f32 %v210, %v349
        %v381 = vmul.f32 %v211, %v353
        %v382 = vmul.f32 %v212, %v357
        %v383 = vmul.f32 %v213, %v361
        %v384 = vmul.f32 %v214, %v365
        %v385 = vmul.f32 %v215, %v369
        %v386 = vmul.f32 %v216, %v341
        %v387 = vmul.f32 %v217, %v345
        %v388 = vmul.f32 %v218, %v349
        %v389 = vmul.f32 %v219, %v353
        %v390 = vmul.f32 %v220, %v357
        %v391 = vmul.f32 %v221, %v361
        %v392 = vmul.f32 %v222, %v365
        %v393 = vmul.f32 %v223, %v369
        %v394 = vmul.f32 %v224, %v341
        %v395 = vmul.f32 %v225, %v345
        %v396 = vmul.f32 %v226, %v349
        %v397 = vmul.f32 %v227, %v353
        %v398 = vmul.f32 %v228, %v357
        %v399 = vmul.f32 %v229, %v361
        %v400 = vmul.f32 %v230, %v365
        %v401 = vmul.f32 %v231, %v369
        %v402 = vmul.f32 %v232, %v341
        %v403 = vmul.f32 %v233, %v345
        %v404 = vmul.f32 %v234, %v349
        %v405 = vmul.f32 %v235, %v353
        %v406 = vmul.f32 %v236, %v357
        %v407 = vmul.f32 %v237, %v361
        %v408 = vmul.f32 %v238, %v365
        %v409 = vmul.f32 %v239, %v369
        %v410 = vmul.f32 %v240, %v341
        %v411 = vmul.f32 %v241, %v345
        %v412 = vmul.f32 %v242, %v349
        %v413 = vmul.f32 %v243, %v353
        %v414 = vmul.f32 %v244, %v357
        %v415 = vmul.f32 %v245, %v361
        %v416 = vmul.f32 %v246, %v365
        %v417 = vmul.f32 %v247, %v369
        %v418 = vmul.f32 %v248, %v341
        %v419 = vmul.f32 %v249, %v345
        %v420 = vmul.f32 %v250, %v349
        %v421 = vmul.f32 %v251, %v353
        %v422 = vmul.f32 %v252, %v357
        %v423 = vmul.f32 %v253, %v361
        %v424 = vmul.f32 %v254, %v365
        %v425 = vmul.f32 %v255, %v369
        %v426 = vmul.f32 %v256, %v341
        %v427 = vmul.f32 %v257, %v345
        %v428 = vmul.f32 %v258, %v349
        %v429 = vmul.f32 %v259, %v353
        %v430 = vmul.f32 %v260, %v357
        %v431 = vmul.f32 %v261, %v361
        %v432 = vmul.f32 %v262, %v365
        %v433 = vmul.f32 %v263, %v369
        %v434 = vmul.f32 %v264, %v341
        %v435 = vmul.f32 %v265, %v345
        %v436 = vmul.f32 %v266, %v349
        %v437 = vmul.f32 %v267, %v353
        %v438 = vmul.f32 %v268, %v357
        %v439 = vmul.f32 %v269, %v361
        %v440 = vmul.f32 %v270, %v365
        %v441 = vmul.f32 %v271, %v369
        %v442 = vmul.f32 %v272, %v341
        %v443 = vmul.f32 %v273, %v345
        %v444 = vmul.f32 %v274, %v349
        %v445 = vmul.f32 %v275, %v353
        %v446 = vmul.f32 %v276, %v357
        %v447 = vmul.f32 %v277, %v361
        %v448 = vmul.f32 %v278, %v365
        %v449 = vmul.f32 %v279, %v369
        %v450 = vmul.f32 %v280, %v341
        %v451 = vmul.f32 %v281, %v345
        %v452 = vmul.f32 %v282, %v349
        %v453 = vmul.f32 %v283, %v353
        %v454 = vmul.f32 %v284, %v357
        %v455 = vmul.f32 %v285, %v361
        %v456 = vmul.f32 %v286, %v365
        %v457 = vmul.f32 %v287, %v369
        %v458 = vmul.f32 %v288, %v341
        %v459 = vmul.f32 %v289, %v345
        %v460 = vmul.f32 %v290, %v349
        %v461 = vmul.f32 %v291, %v353
        %v462 = vmul.f32 %v292, %v357
        %v463 = vmul.f32 %v293, %v361
        %v464 = vmul.f32 %v294, %v365
        %v465 = vmul.f32 %v295, %v369
        %v466 = vmul.f32 %v296, %v341
        %v467 = vmul.f32 %v297, %v345
        %v468 = vmul.f32 %v298, %v349
        %v469 = vmul.f32 %v299, %v353
        %v470 = vmul.f32 %v300, %v357
        %v471 = vmul.f32 %v301, %v361
        %v472 = vmul.f32 %v302, %v365
        %v473 = vmul.f32 %v303, %v369
        %v474 = vmul.f32 %v304, %v341
        %v475 = vmul.f32 %v305, %v345
        %v476 = vmul.f32 %v306, %v349
        %v477 = vmul.f32 %v307, %v353
        %v478 = vmul.f32 %v308, %v357
        %v479 = vmul.f32 %v309, %v361
        %v480 = vmul.f32 %v310, %v365
        %v481 = vmul.f32 %v311, %v369
        %v482 = vmul.f32 %v312, %v341
        %v483 = vmul.f32 %v313, %v345
        %v484 = vmul.f32 %v314, %v349
        %v485 = vmul.f32 %v315, %v353
        %v486 = vmul.f32 %v316, %v357
        %v487 = vmul.f32 %v317, %v361
        %v488 = vmul.f32 %v318, %v365
        %v489 = vmul.f32 %v319, %v369
        %v490 = vmul.f32 %v320, %v341
        %v491 = vmul.f32 %v321, %v345
        %v492 = vmul.f32 %v322, %v349
        %v493 = vmul.f32 %v323, %v353
        %v494 = vmul.f32 %v324, %v357
        %v495 = vmul.f32 %v325, %v361
        %v496 = vmul.f32 %v326, %v365
        %v497 = vmul.f32 %v327, %v369
        %v498 = vmul.f32 %v328, %v341
        %v499 = vmul.f32 %v329, %v345
        %v500 = vmul.f32 %v330, %v349
        %v501 = vmul.f32 %v331, %v353
        %v502 = vmul.f32 %v332, %v357
        %v503 = vmul.f32 %v333, %v361
        %v504 = vmul.f32 %v334, %v365
        %v505 = vmul.f32 %v335, %v369
        %v506 = vadd.f32 %v378, %v379
        %v507 = vadd.f32 %v506, %v380
        %v508 = vadd.f32 %v507, %v381
        %v509 = vadd.f32 %v508, %v382
        %v510 = vadd.f32 %v509, %v383
        %v511 = vadd.f32 %v510, %v384
        %v512 = vadd.f32 %v511, %v385
        %513 = vadd.xlane.f32.xlu0 %v512
        %v514 = vpop.xlane.xlu0 %513
        %v515 = vadd.f32 %v386, %v387
        %v516 = vadd.f32 %v515, %v388
        %v517 = vadd.f32 %v516, %v389
        %v518 = vadd.f32 %v517, %v390
        %v519 = vadd.f32 %v518, %v391
        %v520 = vadd.f32 %v519, %v392
        %v521 = vadd.f32 %v520, %v393
        %522 = vadd.xlane.f32.xlu0 %v521
        %v523 = vpop.xlane.xlu0 %522
        %v524 = vadd.f32 %v394, %v395
        %v525 = vadd.f32 %v524, %v396
        %v526 = vadd.f32 %v525, %v397
        %v527 = vadd.f32 %v526, %v398
        %v528 = vadd.f32 %v527, %v399
        %v529 = vadd.f32 %v528, %v400
        %v530 = vadd.f32 %v529, %v401
        %531 = vadd.xlane.f32.xlu0 %v530
        %v532 = vpop.xlane.xlu0 %531
        %v533 = vadd.f32 %v402, %v403
        %v534 = vadd.f32 %v533, %v404
        %v535 = vadd.f32 %v534, %v405
        %v536 = vadd.f32 %v535, %v406
        %v537 = vadd.f32 %v536, %v407
        %v538 = vadd.f32 %v537, %v408
        %v539 = vadd.f32 %v538, %v409
        %540 = vadd.xlane.f32.xlu0 %v539
        %v541 = vpop.xlane.xlu0 %540
        %v542 = vadd.f32 %v410, %v411
        %v543 = vadd.f32 %v542, %v412
        %v544 = vadd.f32 %v543, %v413
        %v545 = vadd.f32 %v544, %v414
        %v546 = vadd.f32 %v545, %v415
        %v547 = vadd.f32 %v546, %v416
        %v548 = vadd.f32 %v547, %v417
        %549 = vadd.xlane.f32.xlu0 %v548
        %v550 = vpop.xlane.xlu0 %549
        %v551 = vadd.f32 %v418, %v419
        %v552 = vadd.f32 %v551, %v420
        %v553 = vadd.f32 %v552, %v421
        %v554 = vadd.f32 %v553, %v422
        %v555 = vadd.f32 %v554, %v423
        %v556 = vadd.f32 %v555, %v424
        %v557 = vadd.f32 %v556, %v425
        %558 = vadd.xlane.f32.xlu0 %v557
        %v559 = vpop.xlane.xlu0 %558
        %v560 = vadd.f32 %v426, %v427
        %v561 = vadd.f32 %v560, %v428
        %v562 = vadd.f32 %v561, %v429
        %v563 = vadd.f32 %v562, %v430
        %v564 = vadd.f32 %v563, %v431
        %v565 = vadd.f32 %v564, %v432
        %v566 = vadd.f32 %v565, %v433
        %567 = vadd.xlane.f32.xlu0 %v566
        %v568 = vpop.xlane.xlu0 %567
        %v569 = vadd.f32 %v434, %v435
        %v570 = vadd.f32 %v569, %v436
        %v571 = vadd.f32 %v570, %v437
        %v572 = vadd.f32 %v571, %v438
        %v573 = vadd.f32 %v572, %v439
        %v574 = vadd.f32 %v573, %v440
        %v575 = vadd.f32 %v574, %v441
        %576 = vadd.xlane.f32.xlu0 %v575
        %v577 = vpop.xlane.xlu0 %576
        %v578 = vadd.f32 %v442, %v443
        %v579 = vadd.f32 %v578, %v444
        %v580 = vadd.f32 %v579, %v445
        %v581 = vadd.f32 %v580, %v446
        %v582 = vadd.f32 %v581, %v447
        %v583 = vadd.f32 %v582, %v448
        %v584 = vadd.f32 %v583, %v449
        %585 = vadd.xlane.f32.xlu0 %v584
        %v586 = vpop.xlane.xlu0 %585
        %v587 = vadd.f32 %v450, %v451
        %v588 = vadd.f32 %v587, %v452
        %v589 = vadd.f32 %v588, %v453
        %v590 = vadd.f32 %v589, %v454
        %v591 = vadd.f32 %v590, %v455
        %v592 = vadd.f32 %v591, %v456
        %v593 = vadd.f32 %v592, %v457
        %594 = vadd.xlane.f32.xlu0 %v593
        %v595 = vpop.xlane.xlu0 %594
        %v596 = vadd.f32 %v458, %v459
        %v597 = vadd.f32 %v596, %v460
        %v598 = vadd.f32 %v597, %v461
        %v599 = vadd.f32 %v598, %v462
        %v600 = vadd.f32 %v599, %v463
        %v601 = vadd.f32 %v600, %v464
        %v602 = vadd.f32 %v601, %v465
        %603 = vadd.xlane.f32.xlu0 %v602
        %v604 = vpop.xlane.xlu0 %603
        %v605 = vadd.f32 %v466, %v467
        %v606 = vadd.f32 %v605, %v468
        %v607 = vadd.f32 %v606, %v469
        %v608 = vadd.f32 %v607, %v470
        %v609 = vadd.f32 %v608, %v471
        %v610 = vadd.f32 %v609, %v472
        %v611 = vadd.f32 %v610, %v473
        %612 = vadd.xlane.f32.xlu0 %v611
        %v613 = vpop.xlane.xlu0 %612
        %v614 = vadd.f32 %v474, %v475
        %v615 = vadd.f32 %v614, %v476
        %v616 = vadd.f32 %v615, %v477
        %v617 = vadd.f32 %v616, %v478
        %v618 = vadd.f32 %v617, %v479
        %v619 = vadd.f32 %v618, %v480
        %v620 = vadd.f32 %v619, %v481
        %621 = vadd.xlane.f32.xlu0 %v620
        %v622 = vpop.xlane.xlu0 %621
        %v623 = vadd.f32 %v482, %v483
        %v624 = vadd.f32 %v623, %v484
        %v625 = vadd.f32 %v624, %v485
        %v626 = vadd.f32 %v625, %v486
        %v627 = vadd.f32 %v626, %v487
        %v628 = vadd.f32 %v627, %v488
        %v629 = vadd.f32 %v628, %v489
        %630 = vadd.xlane.f32.xlu0 %v629
        %v631 = vpop.xlane.xlu0 %630
        %v632 = vadd.f32 %v490, %v491
        %v633 = vadd.f32 %v632, %v492
        %v634 = vadd.f32 %v633, %v493
        %v635 = vadd.f32 %v634, %v494
        %v636 = vadd.f32 %v635, %v495
        %v637 = vadd.f32 %v636, %v496
        %v638 = vadd.f32 %v637, %v497
        %639 = vadd.xlane.f32.xlu0 %v638
        %v640 = vpop.xlane.xlu0 %639
        %v641 = vadd.f32 %v498, %v499
        %v642 = vadd.f32 %v641, %v500
        %v643 = vadd.f32 %v642, %v501
        %v644 = vadd.f32 %v643, %v502
        %v645 = vadd.f32 %v644, %v503
        %v646 = vadd.f32 %v645, %v504
        %v647 = vadd.f32 %v646, %v505
        %648 = vadd.xlane.f32.xlu0 %v647
        %v649 = vpop.xlane.xlu0 %648
        %s650 = sld [smem:[#allocation2]]
        %v651 = vstv %s650
        %v652 = vadd.f32 %v514, %v651
        %v653 = vadd.f32 %v523, %v651
        %v654 = vadd.f32 %v532, %v651
        %v655 = vadd.f32 %v541, %v651
        %v656 = vadd.f32 %v550, %v651
        %v657 = vadd.f32 %v559, %v651
        %v658 = vadd.f32 %v568, %v651
        %v659 = vadd.f32 %v577, %v651
        %v660 = vadd.f32 %v586, %v651
        %v661 = vadd.f32 %v595, %v651
        %v662 = vadd.f32 %v604, %v651
        %v663 = vadd.f32 %v613, %v651
        %v664 = vadd.f32 %v622, %v651
        %v665 = vadd.f32 %v631, %v651
        %v666 = vadd.f32 %v640, %v651
        %v667 = vadd.f32 %v649, %v651
        %v668 = vmul.f32 %v652, %v652
        %v669 = vmul.f32 %v653, %v653
        %v670 = vmul.f32 %v654, %v654
        %v671 = vmul.f32 %v655, %v655
        %v672 = vmul.f32 %v656, %v656
        %v673 = vmul.f32 %v657, %v657
        %v674 = vmul.f32 %v658, %v658
        %v675 = vmul.f32 %v659, %v659
        %v676 = vmul.f32 %v660, %v660
        %v677 = vmul.f32 %v661, %v661
        %v678 = vmul.f32 %v662, %v662
        %v679 = vmul.f32 %v663, %v663
        %v680 = vmul.f32 %v664, %v664
        %v681 = vmul.f32 %v665, %v665
        %v682 = vmul.f32 %v666, %v666
        %v683 = vmul.f32 %v667, %v667
        %vm684 = vcmask 7168
        %685 = vst.msk [vmem:[%s206] sm:$0xff] %vm684, %v668
        %686 = vst.msk [vmem:[%s206 + $0x8] sm:$0xff] %vm684, %v669
        %687 = vst.msk [vmem:[%s206 + $0x10] sm:$0xff] %vm684, %v670
        %688 = vst.msk [vmem:[%s206 + $0x18] sm:$0xff] %vm684, %v671
        %689 = vst.msk [vmem:[%s206 + $0x20] sm:$0xff] %vm684, %v672
        %690 = vst.msk [vmem:[%s206 + $0x28] sm:$0xff] %vm684, %v673
        %691 = vst.msk [vmem:[%s206 + $0x30] sm:$0xff] %vm684, %v674
        %692 = vst.msk [vmem:[%s206 + $0x38] sm:$0xff] %vm684, %v675
        %693 = vst.msk [vmem:[%s206 + $0x40] sm:$0xff] %vm684, %v676
        %694 = vst.msk [vmem:[%s206 + $0x48] sm:$0xff] %vm684, %v677
        %695 = vst.msk [vmem:[%s206 + $0x50] sm:$0xff] %vm684, %v678
        %696 = vst.msk [vmem:[%s206 + $0x58] sm:$0xff] %vm684, %v679
        %697 = vst.msk [vmem:[%s206 + $0x60] sm:$0xff] %vm684, %v680
        %698 = vst.msk [vmem:[%s206 + $0x68] sm:$0xff] %vm684, %v681
        %699 = vst.msk [vmem:[%s206 + $0x70] sm:$0xff] %vm684, %v682
        %700 = vst.msk [vmem:[%s206 + $0x78] sm:$0xff] %vm684, %v683
        %s701 = smul.u32 16, %s19
        %p702 = scmp.lt.s32.totalorder %s701, 31
        %s703 = scalar_select %p702, %s701, 31
        %s704 = smul.addr %s703, 8
        %s705 = scalar_lea.vmem %s3, %s704
        // Predicated region
        $region41: #{tpu_custom_call.1} parent=31 // pred_check
          %p706 = pneg %p105
        $region42: #{tpu_custom_call.1} parent=31 // pred_check_branch
          %708 = sbr.rel (%p706) target = $region44
        $region43: #{tpu_custom_call.1} parent=31 // pred_region
          %s709 = smul.u32 16, %s19
        $region44: #{tpu_custom_call.1} parent=31 // pred_fallthru
          _
      $region32: #{tpu_custom_call.1} parent=5 // pred_fallthru
        _
      %p710 = scmp.le.s32.totalorder 2, %s14
      // Predicated region
      $region45: #{tpu_custom_call.1} parent=5 // pred_check
        %p711 = pneg %p710
      $region46: #{tpu_custom_call.1} parent=5 // pred_check_branch
        %713 = sbr.rel (%p711) target = $region48
      $region47: #{tpu_custom_call.1} parent=5 // pred_region
        %s714 = ssub.s32 %s14, 2
        // Predicated region
        $region49: #{tpu_custom_call.1} parent=47 // pred_check
          %p715 = pneg %p111
        $region50: #{tpu_custom_call.1} parent=47 // pred_check_branch
          %717 = sbr.rel (%p715) target = $region52
        $region51: #{tpu_custom_call.1} parent=47 // pred_region
          %s718 = smul.u32 16, %s20
          %p719 = scmp.lt.s32.totalorder %s718, 31
          %s720 = scalar_select %p719, %s718, 31
          %s721 = smul.addr %s720, 8
          %s722 = scalar_lea.vmem %s3, %s721
        $region52: #{tpu_custom_call.1} parent=47 // pred_fallthru
          _
      $region48: #{tpu_custom_call.1} parent=5 // pred_fallthru
        _
    $region6: #{tpu_custom_call.1} parent=1 // loop_footer
      %s18 = sadd.s32 1, %s14
    $region7: #{tpu_custom_call.1} parent=1 // loop_footer_branch
      %13 = sbr.rel target = $region3
    $region8: #{tpu_custom_call.1} parent=1 // loop_exit
      _
    %723 = vsyncpa [#allocation4], 1
    %s724 = scalar_lea.sflag [#allocation4], 1
    %725 = vsyncpa %s724, 1
    %726 = vsyncpa [#allocation6], 1

</llo_original>
